<compile_context>
chip_gen: v7x
topology: tpu7x:2x2x1
jax: 0.10.0
libtpu: 0.0.40
codegen_flags: <defaults>
</compile_context>

<pallas_src>
import functools

import jax
import jax.numpy as jnp
from jax.experimental import pallas as pl
from jax.experimental.pallas import tpu as pltpu


def _round_up(x: int, m: int) -> int:
    return ((x + m - 1) // m) * m


def _cdiv(a: int, b: int) -> int:
    return (a + b - 1) // b


def _linear_block_kernel(x_ref, w_ref, b_ref, o_ref, *scratch,
                         true_k: int, negative_slope: float):
    """One (tm, tn) output tile; K reduction runs over grid axis 2."""
    # f32 output -> accumulate straight into the resident output block.
    acc_ref = scratch[0] if scratch else o_ref

    k = pl.program_id(2)
    nk = pl.num_programs(2)
    tk = x_ref.shape[-1]

    @pl.when(k == 0)
    def _init():
        acc_ref[...] = jnp.zeros_like(acc_ref)

    def _accumulate(x, w):
        acc_ref[...] += jnp.dot(x, w, preferred_element_type=jnp.float32)

    k_tail = true_k % tk  # static Python int
    if k_tail == 0:
        # K divides the tile: no masking ever needed.
        _accumulate(x_ref[...], w_ref[...])
    else:
        is_last_k = k == nk - 1

        @pl.when(jnp.logical_not(is_last_k))
        def _full_step():
            _accumulate(x_ref[...], w_ref[...])

        @pl.when(is_last_k)
        def _masked_step():
            # The last K block overhangs the array; the overhang region in
            # VMEM is unspecified.  Zero BOTH operands past the true K so the
            # garbage (even NaN/Inf bit patterns) cannot reach the accumulator.
            x = x_ref[...]
            w = w_ref[...]
            kx = jax.lax.broadcasted_iota(jnp.int32, x.shape, 1)
            kw = jax.lax.broadcasted_iota(jnp.int32, w.shape, 0)
            x = jnp.where(kx < k_tail, x, 0).astype(x.dtype)
            w = jnp.where(kw < k_tail, w, 0).astype(w.dtype)
            _accumulate(x, w)

    @pl.when(k == nk - 1)
    def _epilogue():
        y = acc_ref[...].astype(jnp.float32) + b_ref[...].astype(jnp.float32)
        o_ref[...] = jnp.where(y >= 0, y, negative_slope * y).astype(o_ref.dtype)


def linear_block(x, weight, bias, *, negative_slope=0.2,
                 compute_dtype=jnp.bfloat16, out_dtype=None,
                 tm=256, tn=512, tk=1024):
    """Fused y = leaky_relu(x @ W + b, 0.2).

    x:      (B, K)
    weight: (K, N)   (transpose of PyTorch's (out, in) layout)
    bias:   (N,)
    compute_dtype: dtype streamed to the MXU (default bf16; pass None or
                   jnp.float32 for the exact path). Accumulation is always f32.
    out_dtype: output dtype (defaults to x.dtype).
    """
    B, K = x.shape
    K2, N = weight.shape
    assert K == K2, "input_dim mismatch"
    out_dtype = x.dtype if out_dtype is None else out_dtype

    if compute_dtype is None:
        compute_dtype = jnp.result_type(x.dtype, weight.dtype)
    compute_dtype = jnp.dtype(compute_dtype)
    x_c = x if x.dtype == compute_dtype else x.astype(compute_dtype)
    w_c = weight if weight.dtype == compute_dtype else weight.astype(compute_dtype)
    b_c = bias.reshape(1, N).astype(jnp.float32)

    # Sublane granularity for the compute dtype (f32: 8, bf16: 16, int8/fp8: 32).
    sublane = {4: 8, 2: 16, 1: 32}.get(compute_dtype.itemsize, 8)

    # Clamp tiles for small problems while staying (8, 128)-aligned.
    tm = min(tm, _round_up(B, sublane))
    tn = min(tn, _round_up(N, 128))
    tk = min(tk, _round_up(K, 128))

    m_blocks = _cdiv(B, tm)
    if m_blocks == 1:
        # Small-batch regime: the kernel is pure W-streaming (HBM-bound), so
        # spend VMEM on the W stream -> bigger contiguous W DMAs, fewer steps.
        tk_cap = 2048 if compute_dtype.itemsize <= 2 else 1024
        tn = min(max(tn, 1024), _round_up(N, 128))
        tk = min(max(tk, tk_cap), _round_up(K, 128))
        # v7x megacore: with a single M block, make sure there are >=2 N blocks
        # so both TensorCores get work under "parallel" semantics.
        if N >= 256 and _cdiv(N, tn) == 1:
            tn = _round_up(_cdiv(N, 2), 128)

    grid = (_cdiv(B, tm), _cdiv(N, tn), _cdiv(K, tk))

    # f32 output accumulates directly into o_ref; otherwise use an f32 scratch.
    use_scratch = jnp.dtype(out_dtype) != jnp.dtype(jnp.float32)
    scratch_shapes = [pltpu.VMEM((tm, tn), jnp.float32)] if use_scratch else []

    kernel = functools.partial(_linear_block_kernel, true_k=K,
                               negative_slope=negative_slope)

    return pl.pallas_call(
        kernel,
        out_shape=jax.ShapeDtypeStruct((B, N), out_dtype),
        grid=grid,
        in_specs=[
            pl.BlockSpec((tm, tk), lambda i, j, k: (i, k)),   # x tile
            pl.BlockSpec((tk, tn), lambda i, j, k: (k, j)),   # W tile
            pl.BlockSpec((1, tn), lambda i, j, k: (0, j)),    # bias tile
        ],
        out_specs=pl.BlockSpec((tm, tn), lambda i, j, k: (i, j)),
        scratch_shapes=scratch_shapes,
        compiler_params=pltpu.CompilerParams(
            dimension_semantics=("parallel", "parallel", "arbitrary"),
        ),
    )(x_c, w_c, b_c)


def init_linear_params(key, input_dim, output_dim):
    """Deterministic init matching nn.Linear defaults: U(+/- 1/sqrt(fan_in))."""
    kw, kb = jax.random.split(key)
    bound = 1.0 / jnp.sqrt(jnp.float32(input_dim))
    # PyTorch stores weight as (out, in); we store the transpose (in, out).
    w = jax.random.uniform(kw, (input_dim, output_dim), jnp.float32,
                           minval=-bound, maxval=bound)
    b = jax.random.uniform(kb, (output_dim,), jnp.float32,
                           minval=-bound, maxval=bound)
    return w, b


def _reference(x, w, b):
    y = x.astype(jnp.float32) @ w.astype(jnp.float32) + b.astype(jnp.float32)
    return jnp.where(y >= 0, y, 0.2 * y)


if __name__ == "__main__":
    key = jax.random.PRNGKey(0)
    k_x, k_p, k_x2, k_p2 = jax.random.split(key, 4)

    # --- small case (typical MLP usage), exact f32 path -----------------------
    batch, input_dim, output_dim = 8, 32, 64
    x = jax.random.normal(k_x, (batch, input_dim), jnp.float32)
    w, b = init_linear_params(k_p, input_dim, output_dim)

    out = jax.block_until_ready(linear_block(x, w, b, compute_dtype=jnp.float32))
    ref = _reference(x, w, b)
    assert out.shape == (batch, output_dim)
    assert jnp.allclose(out, ref, atol=1e-4, rtol=1e-4), "f32 small case mismatch"

    # --- default bf16-streaming path on the small case ------------------------
    out_bf = jax.block_until_ready(linear_block(x, w, b))
    assert jnp.allclose(out_bf, ref, atol=5e-2, rtol=5e-2), "bf16 small case mismatch"

    # --- larger case: multi-block N, unaligned B/K/N, K-tail masking ----------
    B2, K2, N2 = 192, 200, 384      # none are tile multiples
    x2 = jax.random.normal(k_x2, (B2, K2), jnp.float32)
    w2, b2 = init_linear_params(k_p2, K2, N2)
    ref2 = _reference(x2, w2, b2)

    out2_f32 = jax.block_until_ready(
        linear_block(x2, w2, b2, compute_dtype=jnp.float32))
    assert out2_f32.shape == (B2, N2)
    assert jnp.allclose(out2_f32, ref2, atol=1e-4, rtol=1e-4), "f32 large case mismatch"

    out2_bf16 = jax.block_until_ready(linear_block(x2, w2, b2))
    assert jnp.allclose(out2_bf16, ref2, atol=5e-2, rtol=5e-2), "bf16 large case mismatch"

    # --- bf16-output path (exercises the f32 scratch accumulator) -------------
    out2_lowp = jax.block_until_ready(
        linear_block(x2.astype(jnp.bfloat16), w2.astype(jnp.bfloat16), b2))
    assert out2_lowp.dtype == jnp.bfloat16
    assert jnp.allclose(out2_lowp.astype(jnp.float32), ref2,
                        atol=8e-2, rtol=8e-2), "bf16 output case mismatch"

    print("KERNEL_OK")
</pallas_src>

<mosaic_0001>
module attributes {stable_mosaic.version = 11 : i64} {
  func.func @_linear_block_kernel(%arg0: i32, %arg1: i32, %arg2: i32, %arg3: memref<8x128xf32, #tpu.memory_space<vmem>>, %arg4: memref<128x128xf32, #tpu.memory_space<vmem>>, %arg5: memref<1x128xf32, #tpu.memory_space<vmem>>, %arg6: memref<8x128xf32, #tpu.memory_space<vmem>>) attributes {dimension_semantics = [#tpu.dimension_semantics<parallel>, #tpu.dimension_semantics<parallel>, #tpu.dimension_semantics<arbitrary>], iteration_bounds = array<i64: 1, 1, 1>, scalar_prefetch = 0 : i64, scratch_operands = 0 : i64, tpu.core_type = #tpu.core_type<tc>, window_params = [{transform_indices = @transform_0, window_bounds = array<i64: 8, 128>}, {transform_indices = @transform_1, window_bounds = array<i64: 128, 128>}, {transform_indices = @transform_2, window_bounds = array<i64: 1, 128>}, {transform_indices = @transform_3, window_bounds = array<i64: 8, 128>}]} {
    %c0_i32 = arith.constant 0 : i32
    %0 = arith.cmpi eq, %arg2, %c0_i32 : i32
    %1 = arith.extui %0 : i1 to i32
    %c0_i32_0 = arith.constant 0 : i32
    %2 = arith.cmpi ne, %1, %c0_i32_0 : i32
    scf.if %2 {
      %cst = arith.constant 0.000000e+00 : f32
      %12 = vector.broadcast %cst : f32 to vector<8x128xf32>
      %c0 = arith.constant 0 : index
      %c0_6 = arith.constant 0 : index
      %13 = vector.load %arg6[%c0, %c0_6] : memref<8x128xf32, #tpu.memory_space<vmem>>, vector<8x128xf32>
      tpu.vector_store %arg6[%c0, %c0_6], %12 {strides = array<i32>} : memref<8x128xf32, #tpu.memory_space<vmem>>, vector<8x128xf32>,
    } else {
    }
    %c0_i32_1 = arith.constant 0 : i32
    %3 = arith.cmpi eq, %arg2, %c0_i32_1 : i32
    %true = arith.constant true
    %4 = arith.xori %3, %true : i1
    %5 = arith.extui %4 : i1 to i32
    %c0_i32_2 = arith.constant 0 : i32
    %6 = arith.cmpi ne, %5, %c0_i32_2 : i32
    scf.if %6 {
      %c0 = arith.constant 0 : index
      %c0_6 = arith.constant 0 : index
      %12 = vector.load %arg3[%c0, %c0_6] : memref<8x128xf32, #tpu.memory_space<vmem>>, vector<8x128xf32>
      %c0_7 = arith.constant 0 : index
      %c0_8 = arith.constant 0 : index
      %13 = vector.load %arg4[%c0_7, %c0_8] : memref<128x128xf32, #tpu.memory_space<vmem>>, vector<128x128xf32>
      %c0_9 = arith.constant 0 : index
      %c0_10 = arith.constant 0 : index
      %14 = vector.load %arg6[%c0_9, %c0_10] : memref<8x128xf32, #tpu.memory_space<vmem>>, vector<8x128xf32>
      %cst = arith.constant dense<0.000000e+00> : vector<8x128xf32>
      %15 = tpu.matmul %12, %13, %cst {dimension_numbers = #tpu.dot_dimension_numbers<[1], [0], [0], [1], [0, 0, 1, 1], [], []>} : vector<8x128xf32>, vector<128x128xf32>, vector<8x128xf32> -> vector<8x128xf32>
      %16 = arith.addf %14, %15 : vector<8x128xf32>
      %c0_11 = arith.constant 0 : index
      %c0_12 = arith.constant 0 : index
      %17 = vector.load %arg6[%c0_11, %c0_12] : memref<8x128xf32, #tpu.memory_space<vmem>>, vector<8x128xf32>
      tpu.vector_store %arg6[%c0_11, %c0_12], %16 {strides = array<i32>} : memref<8x128xf32, #tpu.memory_space<vmem>>, vector<8x128xf32>,
    } else {
    }
    %7 = arith.extui %3 : i1 to i32
    %c0_i32_3 = arith.constant 0 : i32
    %8 = arith.cmpi ne, %7, %c0_i32_3 : i32
    scf.if %8 {
      %c0 = arith.constant 0 : index
      %c0_6 = arith.constant 0 : index
      %12 = vector.load %arg3[%c0, %c0_6] : memref<8x128xf32, #tpu.memory_space<vmem>>, vector<8x128xf32>
      %c0_7 = arith.constant 0 : index
      %c0_8 = arith.constant 0 : index
      %13 = vector.load %arg4[%c0_7, %c0_8] : memref<128x128xf32, #tpu.memory_space<vmem>>, vector<128x128xf32>
      %14 = tpu.iota {dimensions = array<i32: 1>} : vector<8x128xi32>
      %15 = tpu.iota {dimensions = array<i32: 0>} : vector<128x128xi32>
      %c32_i32 = arith.constant 32 : i32
      %16 = vector.broadcast %c32_i32 : i32 to vector<8x128xi32>
      %17 = arith.cmpi slt, %14, %16 : vector<8x128xi32>
      %c0_i32_9 = arith.constant 0 : i32
      %18 = arith.sitofp %c0_i32_9 : i32 to f32
      %19 = vector.broadcast %18 : f32 to vector<8x128xf32>
      %20 = arith.select %17, %12, %19 : vector<8x128xi1>, vector<8x128xf32>
      %c32_i32_10 = arith.constant 32 : i32
      %21 = vector.broadcast %c32_i32_10 : i32 to vector<128x128xi32>
      %22 = arith.cmpi slt, %15, %21 : vector<128x128xi32>
      %c0_i32_11 = arith.constant 0 : i32
      %23 = arith.sitofp %c0_i32_11 : i32 to f32
      %24 = vector.broadcast %23 : f32 to vector<128x128xf32>
      %25 = arith.select %22, %13, %24 : vector<128x128xi1>, vector<128x128xf32>
      %c0_12 = arith.constant 0 : index
      %c0_13 = arith.constant 0 : index
      %26 = vector.load %arg6[%c0_12, %c0_13] : memref<8x128xf32, #tpu.memory_space<vmem>>, vector<8x128xf32>
      %cst = arith.constant dense<0.000000e+00> : vector<8x128xf32>
      %27 = tpu.matmul %20, %25, %cst {dimension_numbers = #tpu.dot_dimension_numbers<[1], [0], [0], [1], [0, 0, 1, 1], [], []>} : vector<8x128xf32>, vector<128x128xf32>, vector<8x128xf32> -> vector<8x128xf32>
      %28 = arith.addf %26, %27 : vector<8x128xf32>
      %c0_14 = arith.constant 0 : index
      %c0_15 = arith.constant 0 : index
      %29 = vector.load %arg6[%c0_14, %c0_15] : memref<8x128xf32, #tpu.memory_space<vmem>>, vector<8x128xf32>
      tpu.vector_store %arg6[%c0_14, %c0_15], %28 {strides = array<i32>} : memref<8x128xf32, #tpu.memory_space<vmem>>, vector<8x128xf32>,
    } else {
    }
    %c0_i32_4 = arith.constant 0 : i32
    %9 = arith.cmpi eq, %arg2, %c0_i32_4 : i32
    %10 = arith.extui %9 : i1 to i32
    %c0_i32_5 = arith.constant 0 : i32
    %11 = arith.cmpi ne, %10, %c0_i32_5 : i32
    scf.if %11 {
      %c0 = arith.constant 0 : index
      %c0_6 = arith.constant 0 : index
      %12 = vector.load %arg6[%c0, %c0_6] : memref<8x128xf32, #tpu.memory_space<vmem>>, vector<8x128xf32>
      %c0_7 = arith.constant 0 : index
      %c0_8 = arith.constant 0 : index
      %13 = vector.load %arg5[%c0_7, %c0_8] : memref<1x128xf32, #tpu.memory_space<vmem>>, vector<1x128xf32>
      %14 = vector.broadcast %13 : vector<1x128xf32> to vector<8x128xf32>
      %15 = arith.addf %12, %14 : vector<8x128xf32>
      %cst = arith.constant 0.000000e+00 : f32
      %16 = vector.broadcast %cst : f32 to vector<8x128xf32>
      %17 = arith.cmpf oge, %15, %16 : vector<8x128xf32>
      %cst_9 = arith.constant 2.000000e-01 : f32
      %18 = vector.broadcast %cst_9 : f32 to vector<8x128xf32>
      %19 = arith.mulf %18, %15 : vector<8x128xf32>
      %20 = arith.select %17, %15, %19 : vector<8x128xi1>, vector<8x128xf32>
      %c0_10 = arith.constant 0 : index
      %c0_11 = arith.constant 0 : index
      %21 = vector.load %arg6[%c0_10, %c0_11] : memref<8x128xf32, #tpu.memory_space<vmem>>, vector<8x128xf32>
      tpu.vector_store %arg6[%c0_10, %c0_11], %20 {strides = array<i32>} : memref<8x128xf32, #tpu.memory_space<vmem>>, vector<8x128xf32>,
    } else {
    }
    return
  }
  func.func @transform_0(%arg0: i32, %arg1: i32, %arg2: i32) -> (i32, i32) {
    %c0_i32 = arith.constant 0 : i32
    return %arg0, %arg2 : i32, i32
  }
  func.func @transform_1(%arg0: i32, %arg1: i32, %arg2: i32) -> (i32, i32) {
    %c0_i32 = arith.constant 0 : i32
    return %arg2, %arg1 : i32, i32
  }
  func.func @transform_2(%arg0: i32, %arg1: i32, %arg2: i32) -> (i32, i32) {
    %c0_i32 = arith.constant 0 : i32
    %c0_i32_0 = arith.constant 0 : i32
    return %c0_i32, %arg1 : i32, i32
  }
  func.func @transform_3(%arg0: i32, %arg1: i32, %arg2: i32) -> (i32, i32) {
    %c0_i32 = arith.constant 0 : i32
    return %arg0, %arg1 : i32, i32
  }
}

</mosaic_0001>

<llo_original>
// kernel: tpu_custom_call.1
$region0: #{tpu_custom_call.1}
  #allocation0 [shape = 'u32[]', space=smem, size = 0x4, offset = 0x4, fixed_abs, tag = 'smem constant byte address 0x4 - core index']
  #allocation1 [shape = 'u32[144,128]{1,0:T(1,128)}', space=vmem, size = 0x12000, scoped, tag = 'internal scratch']
  %s0 = inlined_call_operand.hbm [shape: f32[8,32], index: 0, kind: input, shape index: {}]
  %s1 = inlined_call_operand.hbm [shape: f32[32,64], index: 1, kind: input, shape index: {}]
  %s2 = inlined_call_operand.vmem [shape: f32[1,64], index: 2, kind: input, shape index: {}]
  %s3 = inlined_call_operand.hbm [shape: f32[8,64], index: 3, kind: output, shape index: {}]
  %s4 = sld [smem:[#allocation0]]
  $region42: #{tpu_custom_call.1} parent=0
    _
  %s6 = ssub.s32 1, %s4
  %s7 = scalar_select 0, %s6, %s4
  $region1: #{tpu_custom_call.1} parent=0
    #allocation2 [shape = 'u8[4096]{0}', space=vmem, size = 0x1000, scoped, tag = 'input window, operand 0, single buffered']
    #allocation3 [shape = 's32[1]{0}', space=sflag, size = 0x4, scoped, tag = 'scoped memory for tpu_custom_call.1']
    #allocation4 [shape = 's32[1]{0}', space=sflag, size = 0x4, scoped, tag = 'scoped memory for tpu_custom_call.1']
    #allocation5 [shape = 'u8[65536]{0}', space=vmem, size = 0x10000, scoped, tag = 'input window, operand 1, single buffered']
    #allocation6 [shape = 's32[1]{0}', space=sflag, size = 0x4, scoped, tag = 'scoped memory for tpu_custom_call.1']
    #allocation7 [shape = 'u8[4096]{0}', space=vmem, size = 0x1000, scoped, tag = 'output window, operand 0, single buffered']
    %8 = vsyncpa [#allocation3], 0
    %9 = vsyncpa [#allocation6], 0
    %10 = vsyncpa [#allocation4], 0
    // Predicated region
    $region2: #{tpu_custom_call.1} parent=1 // pred_check
      _
    $region3: #{tpu_custom_call.1} parent=1 // pred_check_branch
      %12 = sbr.rel (0) target = $region5
    $region4: #{tpu_custom_call.1} parent=1 // pred_region
      %s14 = ssub.s32 128, 128
      %15 = vsyncadd [#allocation3], %s14
      %s17 = sshll.u32 [#allocation2], 4
      %s18 = int_to_ptr.vmem [resolvable:$true] %s17
      %20 = dma.hbm_to_vmem [thread:$0]  %s0, 128, %s18, [#allocation3]
    $region5: #{tpu_custom_call.1} parent=1 // pred_fallthru
      _
    // Predicated region
    $region6: #{tpu_custom_call.1} parent=1 // pred_check
      _
    $region7: #{tpu_custom_call.1} parent=1 // pred_check_branch
      %22 = sbr.rel (0) target = $region9
    $region8: #{tpu_custom_call.1} parent=1 // pred_region
      %s24 = ssub.s32 2048, 512
      %25 = vsyncadd [#allocation6], %s24
      %s26 = sshll.u32 [#allocation5], 4
      %s27 = int_to_ptr.vmem [resolvable:$true] %s26
      %32 = dma.hbm_to_vmem [thread:$0]  %s1, 512, %s27, [#allocation6], 128, 128, 8
    $region9: #{tpu_custom_call.1} parent=1 // pred_fallthru
      _
    // Predicated region
    $region10: #{tpu_custom_call.1} parent=1 // pred_check
      _
    $region11: #{tpu_custom_call.1} parent=1 // pred_check_branch
      %34 = sbr.rel (0) target = $region13
    $region12: #{tpu_custom_call.1} parent=1 // pred_region
      _
    $region13: #{tpu_custom_call.1} parent=1 // pred_fallthru
      _
    // Predicated region
    $region14: #{tpu_custom_call.1} parent=1 // pred_check
      _
    $region15: #{tpu_custom_call.1} parent=1 // pred_check_branch
      %36 = sbr.rel (0) target = $region17
    $region16: #{tpu_custom_call.1} parent=1 // pred_region
      %37 = dma.done [#allocation3], 128
    $region17: #{tpu_custom_call.1} parent=1 // pred_fallthru
      _
    // Predicated region
    $region18: #{tpu_custom_call.1} parent=1 // pred_check
      _
    $region19: #{tpu_custom_call.1} parent=1 // pred_check_branch
      %39 = sbr.rel (0) target = $region21
    $region20: #{tpu_custom_call.1} parent=1 // pred_region
      %40 = dma.done [#allocation6], 2048
    $region21: #{tpu_custom_call.1} parent=1 // pred_fallthru
      _
    %p41 = scmp.eq.s32.totalorder 0, 0
    // Predicated region
    $region22: #{tpu_custom_call.1} parent=1 // pred_check
      %p42 = pneg %p41
    $region23: #{tpu_custom_call.1} parent=1 // pred_check_branch
      %44 = sbr.rel (%p42) target = $region25
    $region24: #{tpu_custom_call.1} parent=1 // pred_region
      %45 = vst [vmem:[#allocation7] sm:$0xff] 0.0
    $region25: #{tpu_custom_call.1} parent=1 // pred_fallthru
      _
    %p46 = scmp.ne.s32.totalorder 0, 0
    // Predicated region
    $region26: #{tpu_custom_call.1} parent=1 // pred_check
      %p47 = pneg %p46
    $region27: #{tpu_custom_call.1} parent=1 // pred_check_branch
      %49 = sbr.rel (%p47) target = $region29
    $region28: #{tpu_custom_call.1} parent=1 // pred_region
      %v50 = vld [vmem:[#allocation2] sm:$0xff]
      %v51 = vld [vmem:[#allocation5] sm:$0xff]
      %v52 = vld [vmem:[#allocation5 + $0x8] sm:$0xff]
      %v53 = vld [vmem:[#allocation5 + $0x10] sm:$0xff]
      %v54 = vld [vmem:[#allocation5 + $0x18] sm:$0xff]
      %v55 = vld [vmem:[#allocation5 + $0x20] sm:$0xff]
      %v56 = vld [vmem:[#allocation5 + $0x28] sm:$0xff]
      %v57 = vld [vmem:[#allocation5 + $0x30] sm:$0xff]
      %v58 = vld [vmem:[#allocation5 + $0x38] sm:$0xff]
      %v59 = vld [vmem:[#allocation5 + $0x40] sm:$0xff]
      %v60 = vld [vmem:[#allocation5 + $0x48] sm:$0xff]
      %v61 = vld [vmem:[#allocation5 + $0x50] sm:$0xff]
      %v62 = vld [vmem:[#allocation5 + $0x58] sm:$0xff]
      %v63 = vld [vmem:[#allocation5 + $0x60] sm:$0xff]
      %v64 = vld [vmem:[#allocation5 + $0x68] sm:$0xff]
      %v65 = vld [vmem:[#allocation5 + $0x70] sm:$0xff]
      %v66 = vld [vmem:[#allocation5 + $0x78] sm:$0xff]
      %v67 = vld [vmem:[#allocation7] sm:$0xff]
      %68 = vmatprep.subr.mxu0 0.0
      %69 = vmatpush1.msra.mxu0 %v51
      %70 = vmatprep.subr.mxu0 0.0
      %71 = vmatpush1.msra.mxu0 %v52
      %72 = vmatprep.subr.mxu0 0.0
      %73 = vmatpush1.msra.mxu0 %v53
      %74 = vmatprep.subr.mxu0 0.0
      %75 = vmatpush1.msra.mxu0 %v54
      %76 = vmatprep.subr.mxu0 0.0
      %77 = vmatpush1.msra.mxu0 %v55
      %78 = vmatprep.subr.mxu0 0.0
      %79 = vmatpush1.msra.mxu0 %v56
      %80 = vmatprep.subr.mxu0 0.0
      %81 = vmatpush1.msra.mxu0 %v57
      %82 = vmatprep.subr.mxu0 0.0
      %83 = vmatpush1.msra.mxu0 %v58
      %84 = vmatprep.subr.mxu0 0.0
      %85 = vmatpush1.msra.mxu0 %v59
      %86 = vmatprep.subr.mxu0 0.0
      %87 = vmatpush1.msra.mxu0 %v60
      %88 = vmatprep.subr.mxu0 0.0
      %89 = vmatpush1.msra.mxu0 %v61
      %90 = vmatprep.subr.mxu0 0.0
      %91 = vmatpush1.msra.mxu0 %v62
      %92 = vmatprep.subr.mxu0 0.0
      %93 = vmatpush1.msra.mxu0 %v63
      %94 = vmatprep.subr.mxu0 0.0
      %95 = vmatpush1.msra.mxu0 %v64
      %96 = vmatprep.subr.mxu0 0.0
      %97 = vmatpush1.msra.mxu0 %v65
      %98 = vmatprep.subr.mxu0 0.0
      %99 = vmatpush1.msra.mxu0 %v66
      %100 = vmatprep.subr.mxu0 0.0
      %101 = vmatpush1.msra.mxu0 0.0
      %102 = vmatprep.subr.mxu0 0.0
      %103 = vmatpush1.msra.mxu0 0.0
      %104 = vmatprep.subr.mxu0 0.0
      %105 = vmatpush1.msra.mxu0 0.0
      %106 = vmatprep.subr.mxu0 0.0
      %107 = vmatpush1.msra.mxu0 0.0
      %108 = vmatprep.subr.mxu0 0.0
      %109 = vmatpush1.msra.mxu0 0.0
      %110 = vmatprep.subr.mxu0 0.0
      %111 = vmatpush1.msra.mxu0 0.0
      %112 = vmatprep.subr.mxu0 0.0
      %113 = vmatpush1.msra.mxu0 0.0
      %114 = vmatprep.subr.mxu0 0.0
      %115 = vmatpush1.msra.mxu0 0.0
      %116 = vmatprep.subr.mxu0 0.0
      %117 = vmatpush1.msra.mxu0 0.0
      %118 = vmatprep.subr.mxu0 0.0
      %119 = vmatpush1.msra.mxu0 0.0
      %120 = vmatprep.subr.mxu0 0.0
      %121 = vmatpush1.msra.mxu0 0.0
      %122 = vmatprep.subr.mxu0 0.0
      %123 = vmatpush1.msra.mxu0 0.0
      %124 = vmatprep.subr.mxu0 0.0
      %125 = vmatpush1.msra.mxu0 0.0
      %126 = vmatprep.subr.mxu0 0.0
      %127 = vmatpush1.msra.mxu0 0.0
      %128 = vmatprep.subr.mxu0 0.0
      %129 = vmatpush1.msra.mxu0 0.0
      %130 = vmatprep.subr.mxu0 0.0
      %131 = vmatpush1.msra.mxu0 0.0
      %132 = vmatprep.mubr.f32.mxu0 0.0
      %133 = vmatmul.mubr.f32.gmra.mrb[0].mxu0 %v50
      %v134 = vpop.f32.mrb[0].mxu0
      %v135 = vadd.f32 0.0, %v134
      %v136 = vpop.f32.mrb[0].mxu0
      %137 = vdwg.mxu0
      %v138 = vadd.f32 %v67, %v135
      %139 = vst [vmem:[#allocation7] sm:$0xff] %v138
    $region29: #{tpu_custom_call.1} parent=1 // pred_fallthru
      _
    // Predicated region
    $region30: #{tpu_custom_call.1} parent=1 // pred_check
      %p140 = pneg %p41
    $region31: #{tpu_custom_call.1} parent=1 // pred_check_branch
      %142 = sbr.rel (%p140) target = $region33
    $region32: #{tpu_custom_call.1} parent=1 // pred_region
      %v143 = vld [vmem:[#allocation2] sm:$0xff]
      %v144 = vld [vmem:[#allocation5] sm:$0xff]
      %v145 = vld [vmem:[#allocation5 + $0x8] sm:$0xff]
      %v146 = vld [vmem:[#allocation5 + $0x10] sm:$0xff]
      %v147 = vld [vmem:[#allocation5 + $0x18] sm:$0xff]
      %v148 = vld [vmem:[#allocation5 + $0x20] sm:$0xff]
      %v149 = vld [vmem:[#allocation5 + $0x28] sm:$0xff]
      %v150 = vld [vmem:[#allocation5 + $0x30] sm:$0xff]
      %v151 = vld [vmem:[#allocation5 + $0x38] sm:$0xff]
      %v152 = vld [vmem:[#allocation5 + $0x40] sm:$0xff]
      %v153 = vld [vmem:[#allocation5 + $0x48] sm:$0xff]
      %v154 = vld [vmem:[#allocation5 + $0x50] sm:$0xff]
      %v155 = vld [vmem:[#allocation5 + $0x58] sm:$0xff]
      %v156 = vld [vmem:[#allocation5 + $0x60] sm:$0xff]
      %v157 = vld [vmem:[#allocation5 + $0x68] sm:$0xff]
      %v158 = vld [vmem:[#allocation5 + $0x70] sm:$0xff]
      %v159 = vld [vmem:[#allocation5 + $0x78] sm:$0xff]
      %v160 = vlaneseq
      %v161 = vand.u32 %v160, 127
      %v162 = vlaneseq
      %v163 = vshrl.u32 %v162, 7
      %v164 = vadd.s32 %v163, 8
      %v165 = vadd.s32 %v163, 16
      %v166 = vadd.s32 %v163, 24
      %v167 = vadd.s32 %v163, 32
      %v168 = vadd.s32 %v163, 40
      %v169 = vadd.s32 %v163, 48
      %v170 = vadd.s32 %v163, 56
      %v171 = vadd.s32 %v163, 64
      %v172 = vadd.s32 %v163, 72
      %v173 = vadd.s32 %v163, 80
      %v174 = vadd.s32 %v163, 88
      %v175 = vadd.s32 %v163, 96
      %v176 = vadd.s32 %v163, 104
      %v177 = vadd.s32 %v163, 112
      %v178 = vadd.s32 %v163, 120
      %vm179 = vcmp.lt.s32.totalorder %v161, 32
      %v180 = vsel %vm179, %v143, 0.0
      %vm181 = vcmp.lt.s32.totalorder %v163, 32
      %vm182 = vcmp.lt.s32.totalorder %v164, 32
      %vm183 = vcmp.lt.s32.totalorder %v165, 32
      %vm184 = vcmp.lt.s32.totalorder %v166, 32
      %vm185 = vcmp.lt.s32.totalorder %v167, 32
      %vm186 = vcmp.lt.s32.totalorder %v168, 32
      %vm187 = vcmp.lt.s32.totalorder %v169, 32
      %vm188 = vcmp.lt.s32.totalorder %v170, 32
      %vm189 = vcmp.lt.s32.totalorder %v171, 32
      %vm190 = vcmp.lt.s32.totalorder %v172, 32
      %vm191 = vcmp.lt.s32.totalorder %v173, 32
      %vm192 = vcmp.lt.s32.totalorder %v174, 32
      %vm193 = vcmp.lt.s32.totalorder %v175, 32
      %vm194 = vcmp.lt.s32.totalorder %v176, 32
      %vm195 = vcmp.lt.s32.totalorder %v177, 32
      %vm196 = vcmp.lt.s32.totalorder %v178, 32
      %v197 = vsel %vm181, %v144, 0.0
      %v198 = vsel %vm182, %v145, 0.0
      %v199 = vsel %vm183, %v146, 0.0
      %v200 = vsel %vm184, %v147, 0.0
      %v201 = vsel %vm185, %v148, 0.0
      %v202 = vsel %vm186, %v149, 0.0
      %v203 = vsel %vm187, %v150, 0.0
      %v204 = vsel %vm188, %v151, 0.0
      %v205 = vsel %vm189, %v152, 0.0
      %v206 = vsel %vm190, %v153, 0.0
      %v207 = vsel %vm191, %v154, 0.0
      %v208 = vsel %vm192, %v155, 0.0
      %v209 = vsel %vm193, %v156, 0.0
      %v210 = vsel %vm194, %v157, 0.0
      %v211 = vsel %vm195, %v158, 0.0
      %v212 = vsel %vm196, %v159, 0.0
      %v213 = vld [vmem:[#allocation7] sm:$0xff]
      %214 = vmatprep.subr.mxu0 0.0
      %215 = vmatpush1.msra.mxu0 %v197
      %216 = vmatprep.subr.mxu0 0.0
      %217 = vmatpush1.msra.mxu0 %v198
      %218 = vmatprep.subr.mxu0 0.0
      %219 = vmatpush1.msra.mxu0 %v199
      %220 = vmatprep.subr.mxu0 0.0
      %221 = vmatpush1.msra.mxu0 %v200
      %222 = vmatprep.subr.mxu0 0.0
      %223 = vmatpush1.msra.mxu0 %v201
      %224 = vmatprep.subr.mxu0 0.0
      %225 = vmatpush1.msra.mxu0 %v202
      %226 = vmatprep.subr.mxu0 0.0
      %227 = vmatpush1.msra.mxu0 %v203
      %228 = vmatprep.subr.mxu0 0.0
      %229 = vmatpush1.msra.mxu0 %v204
      %230 = vmatprep.subr.mxu0 0.0
      %231 = vmatpush1.msra.mxu0 %v205
      %232 = vmatprep.subr.mxu0 0.0
      %233 = vmatpush1.msra.mxu0 %v206
      %234 = vmatprep.subr.mxu0 0.0
      %235 = vmatpush1.msra.mxu0 %v207
      %236 = vmatprep.subr.mxu0 0.0
      %237 = vmatpush1.msra.mxu0 %v208
      %238 = vmatprep.subr.mxu0 0.0
      %239 = vmatpush1.msra.mxu0 %v209
      %240 = vmatprep.subr.mxu0 0.0
      %241 = vmatpush1.msra.mxu0 %v210
      %242 = vmatprep.subr.mxu0 0.0
      %243 = vmatpush1.msra.mxu0 %v211
      %244 = vmatprep.subr.mxu0 0.0
      %245 = vmatpush1.msra.mxu0 %v212
      %246 = vmatprep.subr.mxu0 0.0
      %247 = vmatpush1.msra.mxu0 0.0
      %248 = vmatprep.subr.mxu0 0.0
      %249 = vmatpush1.msra.mxu0 0.0
      %250 = vmatprep.subr.mxu0 0.0
      %251 = vmatpush1.msra.mxu0 0.0
      %252 = vmatprep.subr.mxu0 0.0
      %253 = vmatpush1.msra.mxu0 0.0
      %254 = vmatprep.subr.mxu0 0.0
      %255 = vmatpush1.msra.mxu0 0.0
      %256 = vmatprep.subr.mxu0 0.0
      %257 = vmatpush1.msra.mxu0 0.0
      %258 = vmatprep.subr.mxu0 0.0
      %259 = vmatpush1.msra.mxu0 0.0
      %260 = vmatprep.subr.mxu0 0.0
      %261 = vmatpush1.msra.mxu0 0.0
      %262 = vmatprep.subr.mxu0 0.0
      %263 = vmatpush1.msra.mxu0 0.0
      %264 = vmatprep.subr.mxu0 0.0
      %265 = vmatpush1.msra.mxu0 0.0
      %266 = vmatprep.subr.mxu0 0.0
      %267 = vmatpush1.msra.mxu0 0.0
      %268 = vmatprep.subr.mxu0 0.0
      %269 = vmatpush1.msra.mxu0 0.0
      %270 = vmatprep.subr.mxu0 0.0
      %271 = vmatpush1.msra.mxu0 0.0
      %272 = vmatprep.subr.mxu0 0.0
      %273 = vmatpush1.msra.mxu0 0.0
      %274 = vmatprep.subr.mxu0 0.0
      %275 = vmatpush1.msra.mxu0 0.0
      %276 = vmatprep.subr.mxu0 0.0
      %277 = vmatpush1.msra.mxu0 0.0
      %278 = vmatprep.mubr.f32.mxu0 0.0
      %279 = vmatmul.mubr.f32.gmra.mrb[0].mxu0 %v180
      %v280 = vpop.f32.mrb[0].mxu0
      %v281 = vadd.f32 0.0, %v280
      %v282 = vpop.f32.mrb[0].mxu0
      %283 = vdwg.mxu0
      %v284 = vadd.f32 %v213, %v281
      %285 = vst [vmem:[#allocation7] sm:$0xff] %v284
      %v286 = vld [vmem:[#allocation7] sm:$0xff]
      %v287 = vld [vmem:[%s2] sm:$0x1]
      %v289 = vlaneseq
      %v290 = vshrl.u32 %v289, 7
      %v291 = vsub.s32 0, %v290
      %v292 = vrot.slane %v287, %v291
      %v294 = vadd.f32 %v286, %v292
      %vm295 = vcmp.ge.f32.partialorder %v294, 0.0
      %v296 = vmul.f32 %v294, 0.2
      %v297 = vsel %vm295, %v294, %v296
      %298 = vst [vmem:[#allocation7] sm:$0xff] %v297
    $region33: #{tpu_custom_call.1} parent=1 // pred_fallthru
      _
    // Predicated region
    $region34: #{tpu_custom_call.1} parent=1 // pred_check
      _
    $region35: #{tpu_custom_call.1} parent=1 // pred_check_branch
      %300 = sbr.rel (0) target = $region37
    $region36: #{tpu_custom_call.1} parent=1 // pred_region
      %s302 = ssub.s32 128, 128
      %303 = vsyncadd [#allocation4], %s302
      %s305 = sshll.u32 [#allocation7], 4
      %s306 = int_to_ptr.vmem [resolvable:$true] %s305
      %308 = dma.vmem_to_hbm [thread:$0]  %s306, 128, %s3, [#allocation4]
    $region37: #{tpu_custom_call.1} parent=1 // pred_fallthru
      _
    // Predicated region
    $region38: #{tpu_custom_call.1} parent=1 // pred_check
      _
    $region39: #{tpu_custom_call.1} parent=1 // pred_check_branch
      %310 = sbr.rel (0) target = $region41
    $region40: #{tpu_custom_call.1} parent=1 // pred_region
      %311 = dma.done [#allocation4], 128
    $region41: #{tpu_custom_call.1} parent=1 // pred_fallthru
      _
    %312 = vsyncpa [#allocation3], 1
    %313 = vsyncpa [#allocation6], 1
    %314 = vsyncpa [#allocation4], 1

</llo_original>
